<compile_context>
chip_gen: v5e
topology: v5e:2x2
jax: 0.10.0
libtpu: 0.0.40
codegen_flags: <defaults>
</compile_context>

<pallas_src>
import math
import functools

import jax
import jax.numpy as jnp
from jax.experimental import pallas as pl
from jax.experimental.pallas import tpu as pltpu

F32 = jnp.float32
BF16 = jnp.bfloat16
LN_EPS = 1e-12                      # HF ViT layer_norm_eps
VMEM_LIMIT_BYTES = 48 * 1024 * 1024 # above default scoped (16/32 MiB), below v7x physical


# ------------------------------ helpers --------------------------------------
def _row_tile(m):
    # Largest legal row tile, but keep >= 2 grid steps when possible (v7x has 2 TCs).
    if m > 256:
        return 256
    if m > 128:
        return 128
    if m <= 16:
        return m
    half = -(-m // 2)
    return -(-half // 8) * 8        # round up to sublane multiple (<= m for m > 16)


def _e_tile(e):
    # MLP hidden-dim chunk: full when small, else a lane-aligned divisor near 512.
    if e <= 512:
        return e
    for te in (512, 384, 256, 128):
        if e % te == 0:
            return te
    return e


def _resident(shape):
    # Whole-array block with a constant block index -> fetched once, stays VMEM
    # resident across the grid; single-buffered so it doesn't pay 2x VMEM.
    return pl.BlockSpec(shape, lambda *_: (0,) * len(shape),
                        pipeline_mode=pl.Buffered(1))


def _layernorm(x, g, b, eps=LN_EPS):
    mu = jnp.mean(x, axis=-1, keepdims=True)
    var = jnp.mean(jnp.square(x - mu), axis=-1, keepdims=True)
    return (x - mu) * jax.lax.rsqrt(var + eps) * g + b


# ----------------------------- patch embedding --------------------------------
def _patch_embed_kernel(x_ref, w_ref, bias_ref, pos_ref, o_ref):
    # x: (1, TN, K) bf16, w: (K, D) bf16, bias: (1, D) f32, pos: (1, TN, D) f32
    y = jnp.dot(x_ref[0], w_ref[...], preferred_element_type=F32)
    o_ref[0] = (y + bias_ref[...] + pos_ref[0]).astype(o_ref.dtype)


def patch_embed(patches, w, bias, pos_patches):
    B, N, K = patches.shape
    D = w.shape[1]
    TN = _row_tile(N)
    # Token-tile axis outer, batch inner: the pos tile's block index is constant
    # across the inner batch axis -> not re-DMA'd B times.
    return pl.pallas_call(
        _patch_embed_kernel,
        out_shape=jax.ShapeDtypeStruct((B, N, D), F32),
        grid=(pl.cdiv(N, TN), B),
        in_specs=[
            pl.BlockSpec((1, TN, K), lambda j, b: (b, j, 0)),
            _resident((K, D)),
            _resident((1, D)),
            pl.BlockSpec((1, TN, D), lambda j, b: (0, j, 0)),
        ],
        out_specs=pl.BlockSpec((1, TN, D), lambda j, b: (b, j, 0)),
        compiler_params=pltpu.CompilerParams(
            dimension_semantics=("parallel", "parallel")),
    )(patches, w, bias, pos_patches)


# --------------------- LN1 + fused QKV projection (one matmul) ------------------
def _ln_qkv_kernel(h_ref, g_ref, b_ref, wqkv_ref, bqkv_ref, o_ref):
    x = h_ref[...]                                               # (TM, D) f32
    hn = _layernorm(x, g_ref[...], b_ref[...]).astype(BF16)
    qkv = jnp.dot(hn, wqkv_ref[...], preferred_element_type=F32) + bqkv_ref[...]
    o_ref[...] = qkv.astype(o_ref.dtype)                         # (TM, 3D) lane-dense store


def ln_qkv(h2d, ln_g, ln_b, wqkv, bqkv):
    M, D = h2d.shape
    D3 = wqkv.shape[1]
    TM = _row_tile(M)
    return pl.pallas_call(
        _ln_qkv_kernel,
        out_shape=jax.ShapeDtypeStruct((M, D3), BF16),
        grid=(pl.cdiv(M, TM),),
        in_specs=[pl.BlockSpec((TM, D), lambda i: (i, 0)),
                  _resident((1, D)), _resident((1, D)),
                  _resident((D, D3)), _resident((1, D3))],
        out_specs=pl.BlockSpec((TM, D3), lambda i: (i, 0)),
        compiler_params=pltpu.CompilerParams(
            dimension_semantics=("parallel",),
            vmem_limit_bytes=VMEM_LIMIT_BYTES),
    )(h2d, ln_g, ln_b, wqkv, bqkv)


# ------------------------------ attention core ---------------------------------
def _attn_core_kernel(num_heads, qkv_ref, o_ref):
    # qkv: (1, T, 3D) bf16, all heads handled in one grid step via batched einsums.
    T, D3 = qkv_ref.shape[1], qkv_ref.shape[2]
    D = D3 // 3
    dh = D // num_heads
    qkv = qkv_ref[0]
    q, k, v = qkv[:, :D], qkv[:, D:2 * D], qkv[:, 2 * D:]

    def heads(t):                                                # (T, D) -> (H, T, dh)
        return jnp.swapaxes(t.reshape(T, num_heads, dh), 0, 1)

    qh, kh, vh = heads(q), heads(k), heads(v)
    # 1/sqrt(dh) already folded into wq at init time.
    s = jnp.einsum('hqd,hkd->hqk', qh, kh, preferred_element_type=F32)
    m = jnp.max(s, axis=-1, keepdims=True)
    p = jnp.exp(s - m)
    denom = jnp.sum(p, axis=-1, keepdims=True)
    p = p * pl.reciprocal(denom, approx=True)                    # EUP, not VALU divide
    ctx = jnp.einsum('hqk,hkd->hqd', p.astype(BF16), vh, preferred_element_type=F32)
    o_ref[0] = jnp.swapaxes(ctx, 0, 1).reshape(T, D).astype(o_ref.dtype)


def attention_core(qkv, num_heads):
    B, T, D3 = qkv.shape
    D = D3 // 3
    return pl.pallas_call(
        functools.partial(_attn_core_kernel, num_heads),
        out_shape=jax.ShapeDtypeStruct((B, T, D), BF16),
        grid=(B,),
        in_specs=[pl.BlockSpec((1, T, D3), lambda b: (b, 0, 0))],
        out_specs=pl.BlockSpec((1, T, D), lambda b: (b, 0, 0)),
        compiler_params=pltpu.CompilerParams(dimension_semantics=("parallel",)),
    )(qkv)


# --------- out-proj + residual + LN2 + MLP(GELU, E-tiled) + residual -------------
def _proj_mlp_kernel(ctx_ref, h_ref, wo_ref, bo_ref,
                     ln2g_ref, ln2b_ref, w1_ref, b1_ref, w2_ref, b2_ref,
                     o_ref, hn_sc):
    e = pl.program_id(1)

    @pl.when(e == 0)
    def _():
        attn = jnp.dot(ctx_ref[...], wo_ref[...],
                       preferred_element_type=F32) + bo_ref[...]
        x1 = h_ref[...] + attn                                   # residual 1 (f32)
        hn_sc[...] = _layernorm(x1, ln2g_ref[...], ln2b_ref[...]).astype(BF16)
        o_ref[...] = x1 + b2_ref[...]                            # init accumulator

    inter = jnp.dot(hn_sc[...], w1_ref[...],
                    preferred_element_type=F32) + b1_ref[...]
    # TODO(synk): HF ViT uses exact (erf) GELU; tanh-approx GELU used here (EUP-friendly).
    inter = jax.nn.gelu(inter, approximate=True).astype(BF16)
    o_ref[...] += jnp.dot(inter, w2_ref[...], preferred_element_type=F32)


def proj_mlp(ctx2d, h2d, wo, bo, ln2g, ln2b, w1, b1, w2, b2):
    M, D = h2d.shape
    E = w1.shape[1]
    TM = _row_tile(M)
    TE = _e_tile(E)
    row = pl.BlockSpec((TM, D), lambda i, e: (i, 0))
    return pl.pallas_call(
        _proj_mlp_kernel,
        out_shape=jax.ShapeDtypeStruct((M, D), F32),
        grid=(pl.cdiv(M, TM), pl.cdiv(E, TE)),
        in_specs=[row, row,
                  _resident((D, D)), _resident((1, D)),
                  _resident((1, D)), _resident((1, D)),
                  pl.BlockSpec((D, TE), lambda i, e: (0, e)),
                  pl.BlockSpec((1, TE), lambda i, e: (0, e)),
                  pl.BlockSpec((TE, D), lambda i, e: (e, 0)),
                  _resident((1, D))],
        out_specs=row,
        scratch_shapes=[pltpu.VMEM((TM, D), BF16)],
        compiler_params=pltpu.CompilerParams(
            dimension_semantics=("parallel", "arbitrary"),
            vmem_limit_bytes=VMEM_LIMIT_BYTES),
    )(ctx2d, h2d, wo, bo, ln2g, ln2b, w1, b1, w2, b2)


# --------------------------- final LayerNorm (CLS) ------------------------------
def _final_ln_kernel(x_ref, g_ref, b_ref, o_ref):
    o_ref[...] = _layernorm(x_ref[...], g_ref[...], b_ref[...]).astype(o_ref.dtype)


def final_ln(cls2d, g, b):
    B, D = cls2d.shape
    vmem = pl.BlockSpec(memory_space=pltpu.MemorySpace.VMEM)
    return pl.pallas_call(
        _final_ln_kernel,
        out_shape=jax.ShapeDtypeStruct((B, D), F32),
        in_specs=[vmem, vmem, vmem],
        out_specs=vmem,
    )(cls2d, g, b)


# ------------------------------- full forward ----------------------------------
def vit_backbone_forward(x, params):
    """x: (B, C, H, W) float32, NCHW like PyTorch. Returns CLS features (B, D)."""
    B, C, H, W = x.shape
    P = params['patch']
    D = params['patch_w'].shape[1]
    num_heads = params['num_heads']
    nH, nW = H // P, W // P
    N = nH * nW
    T = N + 1

    # conv(stride=P, kernel=P) == per-patch flatten (c, ph, pw) + matmul; bf16 at boundary
    patches = x.reshape(B, C, nH, P, nW, P).transpose(0, 2, 4, 1, 3, 5)
    patches = patches.reshape(B, N, C * P * P).astype(BF16)

    pos = params['pos_emb']                                      # (1, T, D)
    emb = patch_embed(patches, params['patch_w'], params['patch_b'],
                      pos[:, 1:, :])                             # (B, N, D), pos fused
    cls = jnp.broadcast_to(params['cls_token'] + pos[:, :1, :], (B, 1, D))
    h = jnp.concatenate([cls, emb], axis=1)                      # (B, T, D) f32

    h2d = h.reshape(B * T, D)
    for layer in params['layers']:
        qkv = ln_qkv(h2d, layer['ln1g'], layer['ln1b'],
                     layer['wqkv'], layer['bqkv'])               # (B*T, 3D) bf16
        ctx = attention_core(qkv.reshape(B, T, 3 * D), num_heads)  # (B, T, D) bf16
        h2d = proj_mlp(ctx.reshape(B * T, D), h2d,
                       layer['wo'], layer['bo'],
                       layer['ln2g'], layer['ln2b'],
                       layer['w1'], layer['b1'],
                       layer['w2'], layer['b2'])                 # (B*T, D) f32

    h = h2d.reshape(B, T, D)
    cls_tok = h[:, 0, :]            # LN is per-token, slice CLS before the final LN
    return final_ln(cls_tok, params['ln_g'], params['ln_b'])     # (B, D)


# ------------------------------ parameter init ----------------------------------
def init_params(key, C, P, D, num_heads, num_layers, num_patches, mlp_dim):
    std = 0.02
    dh = D // num_heads
    scale = 1.0 / math.sqrt(dh)
    keys = jax.random.split(key, 3 + num_layers)
    params = {
        'patch': P,
        'num_heads': num_heads,
        'patch_w': (jax.random.normal(keys[0], (C * P * P, D), F32) * std).astype(BF16),
        'patch_b': jnp.zeros((1, D), F32),
        'cls_token': jax.random.normal(keys[1], (1, 1, D), F32) * std,
        'pos_emb': jax.random.normal(keys[2], (1, num_patches + 1, D), F32) * std,
        'ln_g': jnp.ones((1, D), F32),
        'ln_b': jnp.zeros((1, D), F32),
        'layers': [],
    }
    for l in range(num_layers):
        lk = jax.random.split(keys[3 + l], 6)
        wq = jax.random.normal(lk[0], (D, D), F32) * std
        wk = jax.random.normal(lk[1], (D, D), F32) * std
        wv = jax.random.normal(lk[2], (D, D), F32) * std
        bq = jnp.zeros((D,), F32)
        bk = jnp.zeros((D,), F32)
        bv = jnp.zeros((D,), F32)
        # Fuse Q/K/V into one (D, 3D) weight; fold 1/sqrt(dh) into the Q slice.
        wqkv = jnp.concatenate([wq * scale, wk, wv], axis=1).astype(BF16)
        bqkv = jnp.concatenate([bq * scale, bk, bv]).reshape(1, 3 * D).astype(F32)
        params['layers'].append(dict(
            ln1g=jnp.ones((1, D), F32), ln1b=jnp.zeros((1, D), F32),
            wqkv=wqkv, bqkv=bqkv,
            wo=(jax.random.normal(lk[3], (D, D), F32) * std).astype(BF16),
            bo=jnp.zeros((1, D), F32),
            ln2g=jnp.ones((1, D), F32), ln2b=jnp.zeros((1, D), F32),
            w1=(jax.random.normal(lk[4], (D, mlp_dim), F32) * std).astype(BF16),
            b1=jnp.zeros((1, mlp_dim), F32),
            w2=(jax.random.normal(lk[5], (mlp_dim, D), F32) * std).astype(BF16),
            b2=jnp.zeros((1, D), F32),
        ))
    return params


if __name__ == "__main__":
    # Small, DeiT-tiny-like-but-tiny configuration
    B, C, IMG, P = 2, 3, 16, 4          # 16x16 image, 4x4 patches -> 16 patches + CLS
    D, HEADS, LAYERS = 64, 2, 2
    MLP = 4 * D

    key = jax.random.PRNGKey(0)
    pkey, xkey = jax.random.split(key)

    params = init_params(pkey, C, P, D, HEADS, LAYERS,
                         num_patches=(IMG // P) ** 2, mlp_dim=MLP)
    x = jax.random.normal(xkey, (B, C, IMG, IMG), F32)

    cls_features = vit_backbone_forward(x, params)
    jax.block_until_ready(cls_features)
    assert cls_features.shape == (B, D)
    print("KERNEL_OK")
</pallas_src>

<mosaic_0001>
module attributes {stable_mosaic.version = 11 : i64} {
  func.func @_patch_embed_kernel(%arg0: i32, %arg1: i32, %arg2: memref<1x16x48xbf16, #tpu.memory_space<vmem>>, %arg3: memref<48x64xbf16, #tpu.memory_space<vmem>>, %arg4: memref<1x64xf32, #tpu.memory_space<vmem>>, %arg5: memref<1x16x64xf32, #tpu.memory_space<vmem>>, %arg6: memref<1x16x64xf32, #tpu.memory_space<vmem>>) attributes {dimension_semantics = [#tpu.dimension_semantics<parallel>, #tpu.dimension_semantics<parallel>], iteration_bounds = array<i64: 1, 2>, scalar_prefetch = 0 : i64, scratch_operands = 0 : i64, tpu.core_type = #tpu.core_type<tc>, window_params = [{transform_indices = @transform_0, window_bounds = array<i64: 1, 16, 48>}, {pipeline_mode = #tpu.pipeline_mode<synchronous>, transform_indices = @transform_1, window_bounds = array<i64: 48, 64>}, {pipeline_mode = #tpu.pipeline_mode<synchronous>, transform_indices = @transform_2, window_bounds = array<i64: 1, 64>}, {transform_indices = @transform_3, window_bounds = array<i64: 1, 16, 64>}, {transform_indices = @transform_4, window_bounds = array<i64: 1, 16, 64>}]} {
    %c0 = arith.constant 0 : index
    %c0_0 = arith.constant 0 : index
    %c0_1 = arith.constant 0 : index
    %0 = vector.load %arg2[%c0, %c0_0, %c0_1] : memref<1x16x48xbf16, #tpu.memory_space<vmem>>, vector<1x16x48xbf16>
    %1 = vector.shape_cast %0 : vector<1x16x48xbf16> to vector<16x48xbf16>
    %c0_2 = arith.constant 0 : index
    %c0_3 = arith.constant 0 : index
    %2 = vector.load %arg3[%c0_2, %c0_3] : memref<48x64xbf16, #tpu.memory_space<vmem>>, vector<48x64xbf16>
    %cst = arith.constant dense<0.000000e+00> : vector<16x64xf32>
    %3 = tpu.matmul %1, %2, %cst {dimension_numbers = #tpu.dot_dimension_numbers<[1], [0], [0], [1], [0, 0, 1, 1], [], []>} : vector<16x48xbf16>, vector<48x64xbf16>, vector<16x64xf32> -> vector<16x64xf32>
    %c0_4 = arith.constant 0 : index
    %c0_5 = arith.constant 0 : index
    %4 = vector.load %arg4[%c0_4, %c0_5] : memref<1x64xf32, #tpu.memory_space<vmem>>, vector<1x64xf32>
    %5 = vector.broadcast %4 : vector<1x64xf32> to vector<16x64xf32>
    %6 = arith.addf %3, %5 : vector<16x64xf32>
    %c0_6 = arith.constant 0 : index
    %c0_7 = arith.constant 0 : index
    %c0_8 = arith.constant 0 : index
    %7 = vector.load %arg5[%c0_6, %c0_7, %c0_8] : memref<1x16x64xf32, #tpu.memory_space<vmem>>, vector<1x16x64xf32>
    %8 = vector.shape_cast %7 : vector<1x16x64xf32> to vector<16x64xf32>
    %9 = arith.addf %6, %8 : vector<16x64xf32>
    %c0_9 = arith.constant 0 : index
    %c0_10 = arith.constant 0 : index
    %c0_11 = arith.constant 0 : index
    %10 = vector.load %arg6[%c0_9, %c0_10, %c0_11] : memref<1x16x64xf32, #tpu.memory_space<vmem>>, vector<1x16x64xf32>
    %11 = vector.shape_cast %10 : vector<1x16x64xf32> to vector<16x64xf32>
    %12 = vector.shape_cast %9 : vector<16x64xf32> to vector<1x16x64xf32>
    tpu.vector_store %arg6[%c0_9, %c0_10, %c0_11], %12 {strides = array<i32>} : memref<1x16x64xf32, #tpu.memory_space<vmem>>, vector<1x16x64xf32>,
    return
  }
  func.func @transform_0(%arg0: i32, %arg1: i32) -> (i32, i32, i32) {
    %c0_i32 = arith.constant 0 : i32
    %c0_i32_0 = arith.constant 0 : i32
    return %arg1, %arg0, %c0_i32 : i32, i32, i32
  }
  func.func @transform_1(%arg0: i32, %arg1: i32) -> (i32, i32) {
    %c0_i32 = arith.constant 0 : i32
    %c0_i32_0 = arith.constant 0 : i32
    %c0_i32_1 = arith.constant 0 : i32
    return %c0_i32, %c0_i32_0 : i32, i32
  }
  func.func @transform_2(%arg0: i32, %arg1: i32) -> (i32, i32) {
    %c0_i32 = arith.constant 0 : i32
    %c0_i32_0 = arith.constant 0 : i32
    %c0_i32_1 = arith.constant 0 : i32
    return %c0_i32, %c0_i32_0 : i32, i32
  }
  func.func @transform_3(%arg0: i32, %arg1: i32) -> (i32, i32, i32) {
    %c0_i32 = arith.constant 0 : i32
    %c0_i32_0 = arith.constant 0 : i32
    %c0_i32_1 = arith.constant 0 : i32
    return %c0_i32, %arg0, %c0_i32_0 : i32, i32, i32
  }
  func.func @transform_4(%arg0: i32, %arg1: i32) -> (i32, i32, i32) {
    %c0_i32 = arith.constant 0 : i32
    %c0_i32_0 = arith.constant 0 : i32
    return %arg1, %arg0, %c0_i32 : i32, i32, i32
  }
}

</mosaic_0001>

<llo_original>
// kernel: tpu_custom_call.1
$region0: #{tpu_custom_call.1}
  #allocation0 [shape = 'u32[]', space=smem, size = 0x4, offset = 0x4, fixed_abs, tag = 'smem constant byte address 0x4 - core index']
  #allocation1 [shape = 'u32[72,128]{1,0:T(1,128)}', space=vmem, size = 0x9000, scoped, tag = 'internal scratch']
  %s0 = inlined_call_operand.hbm [shape: bf16[2,16,48], index: 0, kind: input, shape index: {}]
  %s1 = inlined_call_operand.hbm [shape: bf16[48,64], index: 1, kind: input, shape index: {}]
  %s2 = inlined_call_operand.vmem [shape: f32[1,64], index: 2, kind: input, shape index: {}]
  %s3 = inlined_call_operand.hbm [shape: f32[1,16,64], index: 3, kind: input, shape index: {}]
  %s4 = inlined_call_operand.hbm [shape: f32[2,16,64], index: 4, kind: output, shape index: {}]
  %s5 = sld [smem:[#allocation0]]
  $region61: #{tpu_custom_call.1} parent=0
    _
  %s7 = ssub.s32 1, %s5
  %s8 = scalar_select 0, %s7, %s5
  $region1: #{tpu_custom_call.1} parent=0
    #allocation2 [shape = 'u8[8192]{0}', space=vmem, size = 0x2000, scoped, tag = 'input window, operand 0']
    #allocation3 [shape = 's32[2]{0}', space=sflag, size = 0x8, scoped, tag = 'scoped memory for tpu_custom_call.1']
    #allocation4 [shape = 's32[2]{0}', space=sflag, size = 0x8, scoped, tag = 'scoped memory for tpu_custom_call.1']
    #allocation5 [shape = 'u8[12288]{0}', space=vmem, size = 0x3000, scoped, tag = 'input window, operand 1, single buffered']
    #allocation6 [shape = 's32[1]{0}', space=sflag, size = 0x4, scoped, tag = 'scoped memory for tpu_custom_call.1']
    #allocation7 [shape = 'u8[8192]{0}', space=vmem, size = 0x2000, scoped, tag = 'input window, operand 3, single buffered']
    #allocation8 [shape = 'u8[16384]{0}', space=vmem, size = 0x4000, scoped, tag = 'output window, operand 0']
    %9 = vsyncpa [#allocation3], 0
    %s10 = scalar_lea.sflag [#allocation3], 1
    %11 = vsyncpa %s10, 0
    %12 = vsyncpa [#allocation6], 0
    %13 = vsyncpa [#allocation4], 0
    %s14 = scalar_lea.sflag [#allocation4], 1
    %15 = vsyncpa %s14, 0
    loop: start=0, step=1, limit=4
    $region2: #{tpu_custom_call.1} parent=1 // loop_pre_header
      _
    $region3: #{tpu_custom_call.1} parent=1 // loop_header
      %s17 = sphi 0, %s21
      %p18 = scmp.ge.s32.totalorder %s17, 4
      %s24 = sphi 0, %s36
      %s25 = sphi 0, %s32
      %s26 = sphi 0, %s24
      %s27 = sphi 0, %s25
      %s28 = sphi 0, %s26
      %s29 = sphi 0, %s27
      %s41 = sphi 0, %s43
      %s44 = sphi 0, %s41
      %s45 = sphi 0, %s44
      %s61 = sphi 0, %s45
      %s65 = sphi 0, %s65
      %s67 = sphi 0, %s65
      %s68 = sphi 0, %s67
      %s82 = sphi 0, %s68
      %s86 = sphi 0, %s86
      %s88 = sphi 0, %s86
      %s89 = sphi 0, %s88
      %s103 = sphi 0, %s89
      %s109 = sphi 0, %s111
      %s112 = sphi 0, %s109
      %s113 = sphi 0, %s112
      %s129 = sphi 0, %s113
      %s137 = sphi 0, %s139
      %s140 = sphi 0, %s137
      %s141 = sphi 0, %s140
      %s157 = sphi 0, %s141
    $region4: #{tpu_custom_call.1} parent=1 // loop_header_branch
      %20 = sbr.rel (%p18) target = $region8
    $region5: #{tpu_custom_call.1} parent=1 // loop_body
      %s22 = ssub.s32 %s17, 1
      %s23 = ssub.s32 %s17, 2
      %s30 = sadd.s32 1, %s25
      %p31 = scmp.ge.s32.totalorder %s30, 2
      %s32 = scalar_select %p31, 0, %s30
      %s33 = sadd.s32 1, %s24
      %s34 = scalar_select %p31, %s33, %s24
      %p35 = scmp.ge.s32.totalorder %s34, 1
      %s36 = scalar_select %p35, 0, %s34
      %s37 = ssub.s32 %s25, %s32
      %s38 = ssub.s32 %s24, %s36
      %s39 = sor.u32 %s37, %s38
      %p40 = scmp.eq.s32.totalorder %s39, 0
      %s42 = sadd.s32 %s41, 1
      %s43 = scalar_select %p40, %s41, %s42
      %p46 = pneg %p40
      %p47 = scmp.eq.s32.totalorder %s17, 1
      %p48 = por %p46, %p47
      %p49 = scmp.ne.s32.totalorder %s41, %s44
      %p50 = scmp.eq.s32.totalorder %s17, 0
      %p51 = por %p49, %p50
      %p52 = scmp.ne.s32.totalorder %s41, %s44
      %p53 = scmp.eq.s32.totalorder %s22, 1
      %p54 = por %p52, %p53
      %p55 = scmp.ne.s32.totalorder %s44, %s45
      %p56 = scmp.eq.s32.totalorder %s22, 0
      %p57 = por %p55, %p56
      %p58 = scmp.ne.s32.totalorder %s44, %s45
      %p59 = scmp.eq.s32.totalorder %s23, 1
      %p60 = por %p58, %p59
      %p62 = scmp.ne.s32.totalorder %s45, %s61
      %p63 = scmp.eq.s32.totalorder %s23, 0
      %p64 = por %p62, %p63
      %s66 = sadd.s32 %s65, 1
      %p69 = scmp.eq.s32.totalorder %s17, 1
      %p70 = scmp.ne.s32.totalorder %s65, %s67
      %p71 = scmp.eq.s32.totalorder %s17, 0
      %p72 = por %p70, %p71
      %p73 = scmp.ne.s32.totalorder %s65, %s67
      %p74 = scmp.eq.s32.totalorder %s22, 1
      %p75 = por %p73, %p74
      %p76 = scmp.ne.s32.totalorder %s67, %s68
      %p77 = scmp.eq.s32.totalorder %s22, 0
      %p78 = por %p76, %p77
      %p79 = scmp.ne.s32.totalorder %s67, %s68
      %p80 = scmp.eq.s32.totalorder %s23, 1
      %p81 = por %p79, %p80
      %p83 = scmp.ne.s32.totalorder %s68, %s82
      %p84 = scmp.eq.s32.totalorder %s23, 0
      %p85 = por %p83, %p84
      %s87 = sadd.s32 %s86, 1
      %p90 = scmp.eq.s32.totalorder %s17, 1
      %p91 = scmp.ne.s32.totalorder %s86, %s88
      %p92 = scmp.eq.s32.totalorder %s17, 0
      %p93 = por %p91, %p92
      %p94 = scmp.ne.s32.totalorder %s86, %s88
      %p95 = scmp.eq.s32.totalorder %s22, 1
      %p96 = por %p94, %p95
      %p97 = scmp.ne.s32.totalorder %s88, %s89
      %p98 = scmp.eq.s32.totalorder %s22, 0
      %p99 = por %p97, %p98
      %p100 = scmp.ne.s32.totalorder %s88, %s89
      %p101 = scmp.eq.s32.totalorder %s23, 1
      %p102 = por %p100, %p101
      %p104 = scmp.ne.s32.totalorder %s89, %s103
      %p105 = scmp.eq.s32.totalorder %s23, 0
      %p106 = por %p104, %p105
      %s107 = ssub.s32 %s24, %s36
      %p108 = scmp.eq.s32.totalorder %s107, 0
      %s110 = sadd.s32 %s109, 1
      %s111 = scalar_select %p108, %s109, %s110
      %p114 = pneg %p108
      %p115 = scmp.eq.s32.totalorder %s17, 1
      %p116 = por %p114, %p115
      %p117 = scmp.ne.s32.totalorder %s109, %s112
      %p118 = scmp.eq.s32.totalorder %s17, 0
      %p119 = por %p117, %p118
      %p120 = scmp.ne.s32.totalorder %s109, %s112
      %p121 = scmp.eq.s32.totalorder %s22, 1
      %p122 = por %p120, %p121
      %p123 = scmp.ne.s32.totalorder %s112, %s113
      %p124 = scmp.eq.s32.totalorder %s22, 0
      %p125 = por %p123, %p124
      %p126 = scmp.ne.s32.totalorder %s112, %s113
      %p127 = scmp.eq.s32.totalorder %s23, 1
      %p128 = por %p126, %p127
      %p130 = scmp.ne.s32.totalorder %s113, %s129
      %p131 = scmp.eq.s32.totalorder %s23, 0
      %p132 = por %p130, %p131
      %s133 = ssub.s32 %s25, %s32
      %s134 = ssub.s32 %s24, %s36
      %s135 = sor.u32 %s133, %s134
      %p136 = scmp.eq.s32.totalorder %s135, 0
      %s138 = sadd.s32 %s137, 1
      %s139 = scalar_select %p136, %s137, %s138
      %p142 = pneg %p136
      %p143 = scmp.eq.s32.totalorder %s17, 1
      %p144 = por %p142, %p143
      %p145 = scmp.ne.s32.totalorder %s137, %s140
      %p146 = scmp.eq.s32.totalorder %s17, 0
      %p147 = por %p145, %p146
      %p148 = scmp.ne.s32.totalorder %s137, %s140
      %p149 = scmp.eq.s32.totalorder %s22, 1
      %p150 = por %p148, %p149
      %p151 = scmp.ne.s32.totalorder %s140, %s141
      %p152 = scmp.eq.s32.totalorder %s22, 0
      %p153 = por %p151, %p152
      %p154 = scmp.ne.s32.totalorder %s140, %s141
      %p155 = scmp.eq.s32.totalorder %s23, 1
      %p156 = por %p154, %p155
      %p158 = scmp.ne.s32.totalorder %s141, %s157
      %p159 = scmp.eq.s32.totalorder %s23, 0
      %p160 = por %p158, %p159
      %p161 = scmp.le.s32.totalorder 1, %s17
      %p162 = scmp.lt.s32.totalorder %s17, 3
      %p163 = pnand %p161, %p162
      %p164 = pneg %p163
      // Predicated region
      $region9: #{tpu_custom_call.1} parent=5 // pred_check
        _
      $region10: #{tpu_custom_call.1} parent=5 // pred_check_branch
        %166 = sbr.rel (%p163) target = $region12
      $region11: #{tpu_custom_call.1} parent=5 // pred_region
        %s167 = ssub.s32 %s17, 1
        // Predicated region
        $region13: #{tpu_custom_call.1} parent=11 // pred_check
          %p168 = pneg %p78
        $region14: #{tpu_custom_call.1} parent=11 // pred_check_branch
          %170 = sbr.rel (%p168) target = $region16
        $region15: #{tpu_custom_call.1} parent=11 // pred_region
          %172 = vsyncadd [#allocation6], 0
          %s173 = sshll.u32 %s1, 4
          %s174 = int_to_ptr.hbm [resolvable:$true] %s173
          %s175 = sshll.u32 [#allocation5], 4
          %s176 = int_to_ptr.vmem [resolvable:$true] %s175
          %181 = dma.hbm_to_vmem [thread:$0]  %s174, 384, %s176, [#allocation6], 64, 64, 4
        $region16: #{tpu_custom_call.1} parent=11 // pred_fallthru
          _
        // Predicated region
        $region17: #{tpu_custom_call.1} parent=11 // pred_check
          %p182 = pneg %p99
        $region18: #{tpu_custom_call.1} parent=11 // pred_check_branch
          %184 = sbr.rel (%p182) target = $region20
        $region19: #{tpu_custom_call.1} parent=11 // pred_region
          _
        $region20: #{tpu_custom_call.1} parent=11 // pred_fallthru
          _
        // Predicated region
        $region21: #{tpu_custom_call.1} parent=11 // pred_check
          %p185 = pneg %p125
        $region22: #{tpu_custom_call.1} parent=11 // pred_check_branch
          %187 = sbr.rel (%p185) target = $region24
        $region23: #{tpu_custom_call.1} parent=11 // pred_region
          %s188 = smul.u32 2, %s26
          %190 = vsyncadd [#allocation6], 0
          %s191 = smul.addr %s188, 8
          %s192 = scalar_lea.hbm %s3, %s191
          %s193 = sshll.u32 %s192, 4
          %s194 = int_to_ptr.hbm [resolvable:$true] %s193
          %s195 = sshll.u32 [#allocation7], 4
          %s196 = int_to_ptr.vmem [resolvable:$true] %s195
          %201 = dma.hbm_to_vmem [thread:$0]  %s194, 256, %s196, [#allocation6], 128, 128, 8
        $region24: #{tpu_custom_call.1} parent=11 // pred_fallthru
          _
      $region12: #{tpu_custom_call.1} parent=5 // pred_fallthru
        _
      %p202 = scmp.lt.s32.totalorder %s17, 2
      // Predicated region
      $region25: #{tpu_custom_call.1} parent=5 // pred_check
        %p203 = pneg %p202
      $region26: #{tpu_custom_call.1} parent=5 // pred_check_branch
        %205 = sbr.rel (%p203) target = $region28
      $region27: #{tpu_custom_call.1} parent=5 // pred_region
        // Predicated region
        $region29: #{tpu_custom_call.1} parent=27 // pred_check
          %p206 = pneg %p51
        $region30: #{tpu_custom_call.1} parent=27 // pred_check_branch
          %208 = sbr.rel (%p206) target = $region32
        $region31: #{tpu_custom_call.1} parent=27 // pred_region
          %s209 = sand.u32 %s41, 1
          %s210 = scalar_lea.sflag [#allocation3], %s209
          %s211 = sand.u32 %s41, 1
          %s212 = smul.addr %s211, 8
          %s213 = scalar_lea.vmem [#allocation2], %s212
          %s214 = smul.u32 2, %s24
          %216 = vsyncadd %s210, 0
          %s217 = smul.addr %s25, 2
          %s218 = sadd.s32 %s214, %s217
          %s219 = smul.addr %s218, 4
          %s220 = scalar_lea.hbm %s0, %s219
          %s221 = sshll.u32 %s220, 4
          %s222 = int_to_ptr.hbm [resolvable:$true] %s221
          %s223 = sshll.u32 %s213, 4
          %s224 = int_to_ptr.vmem [resolvable:$true] %s223
          %229 = dma.hbm_to_vmem [thread:$0]  %s222, 128, %s224, %s210, 64, 64, 4
        $region32: #{tpu_custom_call.1} parent=27 // pred_fallthru
          _
      $region28: #{tpu_custom_call.1} parent=5 // pred_fallthru
        _
      %p230 = scmp.le.s32.totalorder 1, %s17
      %p231 = scmp.lt.s32.totalorder %s17, 3
      %p232 = pnand %p230, %p231
      %p233 = pneg %p232
      // Predicated region
      $region33: #{tpu_custom_call.1} parent=5 // pred_check
        _
      $region34: #{tpu_custom_call.1} parent=5 // pred_check_branch
        %235 = sbr.rel (%p232) target = $region36
      $region35: #{tpu_custom_call.1} parent=5 // pred_region
        %s236 = ssub.s32 %s17, 1
        %s237 = sand.u32 %s44, 1
        %s238 = scalar_lea.sflag [#allocation3], %s237
        %s239 = sand.u32 %s44, 1
        %s240 = smul.addr %s239, 8
        %s241 = scalar_lea.vmem [#allocation2], %s240
        // Predicated region
        $region37: #{tpu_custom_call.1} parent=35 // pred_check
          %p242 = pneg %p57
        $region38: #{tpu_custom_call.1} parent=35 // pred_check_branch
          %244 = sbr.rel (%p242) target = $region40
        $region39: #{tpu_custom_call.1} parent=35 // pred_region
          %246 = dma.done %s238, 128
        $region40: #{tpu_custom_call.1} parent=35 // pred_fallthru
          _
        // Predicated region
        $region41: #{tpu_custom_call.1} parent=35 // pred_check
          %p247 = pneg %p78
        $region42: #{tpu_custom_call.1} parent=35 // pred_check_branch
          %249 = sbr.rel (%p247) target = $region44
        $region43: #{tpu_custom_call.1} parent=35 // pred_region
          %251 = dma.done [#allocation6], 384
        $region44: #{tpu_custom_call.1} parent=35 // pred_fallthru
          _
        // Predicated region
        $region45: #{tpu_custom_call.1} parent=35 // pred_check
          %p252 = pneg %p125
        $region46: #{tpu_custom_call.1} parent=35 // pred_check_branch
          %254 = sbr.rel (%p252) target = $region48
        $region47: #{tpu_custom_call.1} parent=35 // pred_region
          %256 = dma.done [#allocation6], 256
        $region48: #{tpu_custom_call.1} parent=35 // pred_fallthru
          _
        %s257 = sand.u32 %s44, 1
        %s258 = scalar_lea.sflag [#allocation3], %s257
        %s259 = sand.u32 %s44, 1
        %s260 = smul.addr %s259, 8
        %s261 = scalar_lea.vmem [#allocation2], %s260
        %p262 = pneg %p57
        %p263 = pneg %p54
        %p264 = pneg %p78
        %p265 = pneg %p75
        %p266 = pneg %p99
        %p267 = pneg %p96
        %p268 = pneg %p125
        %p269 = pneg %p122
        %p270 = pneg %p153
        %p271 = pneg %p150
        %s272 = sand.u32 %s140, 1
        %s273 = scalar_lea.sflag [#allocation4], %s272
        %s274 = sand.u32 %s140, 1
        %s275 = smul.addr %s274, 16
        %s276 = scalar_lea.vmem [#allocation8], %s275
        %s277 = smul.u32 2, %s26
        %s278 = smul.u32 2, %s26
        %s279 = smul.u32 2, %s26
        %v281 = vld [vmem:[%s241] sm:$0xf]
        %v282 = vld [vmem:[%s241 + $0x4] sm:$0xf]
        %v283 = vld [vmem:[#allocation5] sm:$0xf]
        %v284 = vld [vmem:[#allocation5 + $0x4] sm:$0xf]
        %v285 = vld [vmem:[#allocation5 + $0x8] sm:$0xf]
        %v286 = vld [vmem:[#allocation5 + $0xc] sm:$0xf]
        %v287 = vld [vmem:[#allocation5 + $0x10] sm:$0xf]
        %v288 = vld [vmem:[#allocation5 + $0x14] sm:$0xf]
        %v289 = vld [vmem:[%s2] sm:$0x1]
        %v291 = vperm.slane %v289, 0
        %v295 = vunpack.c.l.b16 %v281
        %v296 = vunpack.c.l.b16 %v282
        %v297 = vpack.c.b16 %v296, %v295
        %v304 = vunpack.c.l.b16 %v283
        %v305 = vunpack.c.l.b16 %v284
        %v306 = vunpack.c.l.b16 %v285
        %v307 = vunpack.c.l.b16 %v286
        %v308 = vunpack.c.l.b16 %v287
        %v309 = vunpack.c.l.b16 %v288
        %v310 = vpack.c.b16 %v305, %v304
        %v311 = vpack.c.b16 %v307, %v306
        %v312 = vpack.c.b16 %v309, %v308
        %vm316 = vcmask 392192
        %v318 = vsel %vm316, %v297, 0
        %320 = vmatpush.bf16.msra.mxu0 0
        %321 = vmatpush.bf16.msra.mxu0 0
        %322 = vmatpush.bf16.msra.mxu0 0
        %323 = vmatpush.bf16.msra.mxu0 0
        %324 = vmatpush.bf16.msra.mxu0 0
        %325 = vmatpush.bf16.msra.mxu0 %v312
        %326 = vmatpush.bf16.msra.mxu0 %v311
        %327 = vmatpush.bf16.msra.mxu0 %v310
        %328 = vmatmul.bf16.gmra.mxu0 %v318
        %v329 = vpop.f32.mrf.mxu0
        %v330 = vadd.f32 %v291, %v329
        %v331 = vpop.f32.mrf.mxu0
        %v332 = vadd.f32 %v291, %v331
        %333 = vdwg.mxu0
        %v334 = vld [vmem:[#allocation7] sm:$0xff]
        %v335 = vld [vmem:[#allocation7 + $0x8] sm:$0xff]
        %v336 = vadd.f32 %v330, %v334
        %v337 = vadd.f32 %v332, %v335
        %vm338 = vcmask 523264
        %339 = vst.msk [vmem:[%s276] sm:$0xff] %vm338, %v336
        %340 = vst.msk [vmem:[%s276 + $0x8] sm:$0xff] %vm338, %v337
        %s341 = sand.u32 %s140, 1
        %s342 = scalar_lea.sflag [#allocation4], %s341
        %s343 = sand.u32 %s140, 1
        %s344 = smul.addr %s343, 16
        %s345 = scalar_lea.vmem [#allocation8], %s344
        // Predicated region
        $region49: #{tpu_custom_call.1} parent=35 // pred_check
          %p346 = pneg %p150
        $region50: #{tpu_custom_call.1} parent=35 // pred_check_branch
          %348 = sbr.rel (%p346) target = $region52
        $region51: #{tpu_custom_call.1} parent=35 // pred_region
          %s349 = smul.u32 2, %s26
          %351 = vsyncadd %s342, 0
          %s352 = smul.addr %s27, 2
          %s353 = sadd.s32 %s349, %s352
          %s354 = smul.addr %s353, 8
          %s355 = scalar_lea.hbm %s4, %s354
          %s356 = sshll.u32 %s345, 4
          %s357 = int_to_ptr.vmem [resolvable:$true] %s356
          %s358 = sshll.u32 %s355, 4
          %s359 = int_to_ptr.hbm [resolvable:$true] %s358
          %364 = dma.vmem_to_hbm [thread:$0]  %s357, 256, %s359, %s342, 128, 128, 8
        $region52: #{tpu_custom_call.1} parent=35 // pred_fallthru
          _
      $region36: #{tpu_custom_call.1} parent=5 // pred_fallthru
        _
      %p365 = scmp.le.s32.totalorder 2, %s17
      // Predicated region
      $region53: #{tpu_custom_call.1} parent=5 // pred_check
        %p366 = pneg %p365
      $region54: #{tpu_custom_call.1} parent=5 // pred_check_branch
        %368 = sbr.rel (%p366) target = $region56
      $region55: #{tpu_custom_call.1} parent=5 // pred_region
        %s369 = ssub.s32 %s17, 2
        // Predicated region
        $region57: #{tpu_custom_call.1} parent=55 // pred_check
          %p370 = pneg %p156
        $region58: #{tpu_custom_call.1} parent=55 // pred_check_branch
          %372 = sbr.rel (%p370) target = $region60
        $region59: #{tpu_custom_call.1} parent=55 // pred_region
          %s373 = sand.u32 %s141, 1
          %s374 = scalar_lea.sflag [#allocation4], %s373
          %s375 = sand.u32 %s141, 1
          %s376 = smul.addr %s375, 16
          %s377 = scalar_lea.vmem [#allocation8], %s376
          %379 = dma.done %s374, 256
        $region60: #{tpu_custom_call.1} parent=55 // pred_fallthru
          _
      $region56: #{tpu_custom_call.1} parent=5 // pred_fallthru
        _
    $region6: #{tpu_custom_call.1} parent=1 // loop_footer
      %s21 = sadd.s32 1, %s17
    $region7: #{tpu_custom_call.1} parent=1 // loop_footer_branch
      %16 = sbr.rel target = $region3
    $region8: #{tpu_custom_call.1} parent=1 // loop_exit
      _
    %380 = vsyncpa [#allocation3], 1
    %s381 = scalar_lea.sflag [#allocation3], 1
    %382 = vsyncpa %s381, 1
    %383 = vsyncpa [#allocation6], 1
    %384 = vsyncpa [#allocation4], 1
    %s385 = scalar_lea.sflag [#allocation4], 1
    %386 = vsyncpa %s385, 1

</llo_original>
